<compile_context>
chip_gen: v7x
topology: tpu7x:2x2x1
jax: 0.10.0
libtpu: 0.0.40
codegen_flags: <defaults>
</compile_context>

<pallas_src>
import jax
import jax.numpy as jnp
from jax.experimental import pallas as pl
from jax.experimental.pallas import tpu as pltpu


def _round_up(a, b):
    return (a + b - 1) // b * b


def _fbn_kernel(scale_ref, shift_ref, x_ref, o_ref):
    # x_ref:  (T_R, T_HW) tile of the flattened (N*C, H*W) activation slab.
    # scale_ref / shift_ref: (T_R, 1) per-row f32 affine params, broadcast over
    # lanes.  Affine in f32, single cast on the store.
    y = x_ref[...].astype(jnp.float32) * scale_ref[...] + shift_ref[...]
    o_ref[...] = y.astype(o_ref.dtype)


def _pick_tiles(R, HW, itemsize):
    """Lane/row tile sizes + scoped-VMEM limit, per chip generation."""
    LANE = 128
    sub = {4: 8, 2: 16, 1: 32}.get(itemsize, 8)   # sublane granularity

    try:
        vmem_cap = int(pltpu.get_tpu_info().vmem_capacity_bytes)
    except Exception:
        vmem_cap = 64 << 20                       # conservative (v7x-sized)
    # 8 MiB blocks on 128 MiB-VMEM chips (v5e/v6e), 4 MiB on v7x (64 MiB/TC).
    block_budget = (8 << 20) if vmem_cap >= (100 << 20) else (4 << 20)

    # Lane tile: multiple of 128, capped at 8192.  Only the single boundary
    # block along HW pays a masked store; every other vst is full lane-dense.
    t_hw = min(_round_up(HW, LANE), 64 * LANE)

    # Row tile: multiple of the sublane granularity, fills the byte budget.
    rows_fit = max(sub, (block_budget // (t_hw * itemsize)) // sub * sub)
    t_r = min(_round_up(R, sub), rows_fit)

    block_bytes = t_r * t_hw * itemsize
    # Cover 2x double-buffered input + 2x output blocks + headroom; never ask
    # for more than the smallest physical VMEM (64 MiB on v7x).
    vmem_limit = int(min(64 << 20, max(32 << 20, 4 * block_bytes + (8 << 20))))
    return t_r, t_hw, vmem_limit


def frozen_batch_norm_2d(x, weight, bias, running_mean, running_var, eps=1e-5):
    """x: (N, C, H, W). Returns (N, C, H, W). Matches the PyTorch forward."""
    N, C, H, W = x.shape
    HW = H * W
    R = N * C
    dtype = x.dtype
    itemsize = jnp.dtype(dtype).itemsize

    # ---- Fold frozen stats into per-channel scale/shift (f32 math). ---------
    scale = weight.astype(jnp.float32) * jax.lax.rsqrt(
        running_var.astype(jnp.float32) + eps)
    shift = bias.astype(jnp.float32) - running_mean.astype(jnp.float32) * scale

    t_r, t_hw, vmem_limit = _pick_tiles(R, HW, itemsize)

    # ---- Flatten to a lane-dense 2D slab (rows = N*C, lanes = H*W). ---------
    # Pure metadata reshape; no HBM copy.  No padding: ragged boundary blocks
    # are handled by the cdiv grid (OOB reads padded, OOB writes masked).
    x2 = x.reshape(R, HW)
    scale2d = jnp.tile(scale, N).reshape(R, 1)   # row r = n*C + c -> channel r % C
    shift2d = jnp.tile(shift, N).reshape(R, 1)

    # Grid: (rows, spatial).  Spatial MUST stay innermost (fastest-varying) so
    # the scale/shift blocks keep the same block index across the inner loop
    # and Pallas skips their re-DMA.
    grid = (pl.cdiv(R, t_r), pl.cdiv(HW, t_hw))

    out = pl.pallas_call(
        _fbn_kernel,
        out_shape=jax.ShapeDtypeStruct((R, HW), dtype),
        grid_spec=pltpu.PrefetchScalarGridSpec(
            num_scalar_prefetch=0,
            grid=grid,
            in_specs=[
                pl.BlockSpec((t_r, 1), lambda r, s: (r, 0)),      # scale (f32)
                pl.BlockSpec((t_r, 1), lambda r, s: (r, 0)),      # shift (f32)
                pl.BlockSpec((t_r, t_hw), lambda r, s: (r, s)),   # x tile
            ],
            out_specs=pl.BlockSpec((t_r, t_hw), lambda r, s: (r, s)),
        ),
        compiler_params=pltpu.CompilerParams(
            dimension_semantics=("parallel", "parallel"),
            vmem_limit_bytes=vmem_limit,
        ),
        # TODO(synk): pass input_output_aliases={2: 0} when the caller can
        # donate x — saves the output HBM allocation (peak footprint), not
        # bandwidth.  Not enabled here since the demo reuses x for the
        # reference check.
    )(scale2d, shift2d, x2)

    return out.reshape(N, C, H, W)


def _reference(x, weight, bias, running_mean, running_var, eps=1e-5):
    C = x.shape[1]
    w4 = weight.reshape(1, C, 1, 1)
    b4 = bias.reshape(1, C, 1, 1)
    rv4 = running_var.reshape(1, C, 1, 1)
    rm4 = running_mean.reshape(1, C, 1, 1)
    scale = w4 * jax.lax.rsqrt(rv4 + eps)
    shift = b4 - rm4 * scale
    return x * scale + shift


def _check(key, N, C, H, W):
    kx, kw, kb, km, kv = jax.random.split(key, 5)
    x = jax.random.normal(kx, (N, C, H, W), dtype=jnp.float32)
    weight = jnp.ones((C,), jnp.float32) + 0.1 * jax.random.normal(kw, (C,))
    bias = jnp.zeros((C,), jnp.float32) + 0.1 * jax.random.normal(kb, (C,))
    running_mean = 0.1 * jax.random.normal(km, (C,))
    running_var = jnp.ones((C,), jnp.float32) + 0.05 * jnp.abs(
        jax.random.normal(kv, (C,)))

    y = frozen_batch_norm_2d(x, weight, bias, running_mean, running_var)
    y = jax.block_until_ready(y)
    y_ref = _reference(x, weight, bias, running_mean, running_var)

    assert y.shape == (N, C, H, W)
    assert jnp.allclose(y, y_ref, atol=1e-5, rtol=1e-5), (
        float(jnp.max(jnp.abs(y - y_ref))))


if __name__ == "__main__":
    key = jax.random.PRNGKey(0)
    k1, k2 = jax.random.split(key, 2)

    # Small shape consistent with the module (main check).
    _check(k1, N=2, C=4, H=16, W=16)
    # Exercise the ragged-edge path (HW not a multiple of 128, N*C not of 8)
    # without any wrapper-side padding.
    _check(k2, N=2, C=5, H=7, W=7)

    print("KERNEL_OK")
</pallas_src>

<mosaic_0001>
module attributes {stable_mosaic.version = 11 : i64} {
  func.func @_fbn_kernel(%arg0: i32, %arg1: i32, %arg2: memref<8x1xf32, #tpu.memory_space<vmem>>, %arg3: memref<8x1xf32, #tpu.memory_space<vmem>>, %arg4: memref<8x256xf32, #tpu.memory_space<vmem>>, %arg5: memref<8x256xf32, #tpu.memory_space<vmem>>) attributes {dimension_semantics = [#tpu.dimension_semantics<parallel>, #tpu.dimension_semantics<parallel>], iteration_bounds = array<i64: 1, 1>, scalar_prefetch = 0 : i64, scratch_operands = 0 : i64, tpu.core_type = #tpu.core_type<tc>, window_params = [{transform_indices = @transform_0, window_bounds = array<i64: 8, 1>}, {transform_indices = @transform_1, window_bounds = array<i64: 8, 1>}, {transform_indices = @transform_2, window_bounds = array<i64: 8, 256>}, {transform_indices = @transform_3, window_bounds = array<i64: 8, 256>}]} {
    %c0 = arith.constant 0 : index
    %c0_0 = arith.constant 0 : index
    %0 = vector.load %arg4[%c0, %c0_0] : memref<8x256xf32, #tpu.memory_space<vmem>>, vector<8x256xf32>
    %c0_1 = arith.constant 0 : index
    %c0_2 = arith.constant 0 : index
    %1 = vector.load %arg2[%c0_1, %c0_2] : memref<8x1xf32, #tpu.memory_space<vmem>>, vector<8x1xf32>
    %2 = vector.broadcast %1 : vector<8x1xf32> to vector<8x256xf32>
    %3 = arith.mulf %0, %2 : vector<8x256xf32>
    %c0_3 = arith.constant 0 : index
    %c0_4 = arith.constant 0 : index
    %4 = vector.load %arg3[%c0_3, %c0_4] : memref<8x1xf32, #tpu.memory_space<vmem>>, vector<8x1xf32>
    %5 = vector.broadcast %4 : vector<8x1xf32> to vector<8x256xf32>
    %6 = arith.addf %3, %5 : vector<8x256xf32>
    %c0_5 = arith.constant 0 : index
    %c0_6 = arith.constant 0 : index
    %7 = vector.load %arg5[%c0_5, %c0_6] : memref<8x256xf32, #tpu.memory_space<vmem>>, vector<8x256xf32>
    tpu.vector_store %arg5[%c0_5, %c0_6], %6 {strides = array<i32>} : memref<8x256xf32, #tpu.memory_space<vmem>>, vector<8x256xf32>,
    return
  }
  func.func @transform_0(%arg0: i32, %arg1: i32) -> (i32, i32) {
    %c0_i32 = arith.constant 0 : i32
    %c0_i32_0 = arith.constant 0 : i32
    return %arg0, %c0_i32 : i32, i32
  }
  func.func @transform_1(%arg0: i32, %arg1: i32) -> (i32, i32) {
    %c0_i32 = arith.constant 0 : i32
    %c0_i32_0 = arith.constant 0 : i32
    return %arg0, %c0_i32 : i32, i32
  }
  func.func @transform_2(%arg0: i32, %arg1: i32) -> (i32, i32) {
    %c0_i32 = arith.constant 0 : i32
    return %arg0, %arg1 : i32, i32
  }
  func.func @transform_3(%arg0: i32, %arg1: i32) -> (i32, i32) {
    %c0_i32 = arith.constant 0 : i32
    return %arg0, %arg1 : i32, i32
  }
}

</mosaic_0001>

<llo_original>
// kernel: tpu_custom_call.1
$region0: #{tpu_custom_call.1}
  #allocation0 [shape = 'u32[]', space=smem, size = 0x4, offset = 0x4, fixed_abs, tag = 'smem constant byte address 0x4 - core index']
  #allocation1 [shape = 'u32[144,128]{1,0:T(1,128)}', space=vmem, size = 0x12000, scoped, tag = 'internal scratch']
  %s0 = inlined_call_operand.vmem [shape: f32[8,1], index: 0, kind: input, shape index: {}]
  %s1 = inlined_call_operand.vmem [shape: f32[8,1], index: 1, kind: input, shape index: {}]
  %s2 = inlined_call_operand.vmem [shape: f32[8,256], index: 2, kind: input, shape index: {}]
  %s3 = inlined_call_operand.hbm [shape: f32[8,256], index: 3, kind: output, shape index: {}]
  %s4 = sld [smem:[#allocation0]]
  $region22: #{tpu_custom_call.1} parent=0
    _
  %s6 = ssub.s32 1, %s4
  %s7 = scalar_select 0, %s6, %s4
  $region1: #{tpu_custom_call.1} parent=0
    #allocation2 [shape = 'u8[8192]{0}', space=vmem, size = 0x2000, scoped, tag = 'output window, operand 0, single buffered']
    #allocation3 [shape = 's32[1]{0}', space=sflag, size = 0x4, scoped, tag = 'scoped memory for tpu_custom_call.1']
    %8 = vsyncpa [#allocation3], 0
    // Predicated region
    $region2: #{tpu_custom_call.1} parent=1 // pred_check
      _
    $region3: #{tpu_custom_call.1} parent=1 // pred_check_branch
      %10 = sbr.rel (0) target = $region5
    $region4: #{tpu_custom_call.1} parent=1 // pred_region
      _
    $region5: #{tpu_custom_call.1} parent=1 // pred_fallthru
      _
    // Predicated region
    $region6: #{tpu_custom_call.1} parent=1 // pred_check
      _
    $region7: #{tpu_custom_call.1} parent=1 // pred_check_branch
      %12 = sbr.rel (0) target = $region9
    $region8: #{tpu_custom_call.1} parent=1 // pred_region
      _
    $region9: #{tpu_custom_call.1} parent=1 // pred_fallthru
      _
    // Predicated region
    $region10: #{tpu_custom_call.1} parent=1 // pred_check
      _
    $region11: #{tpu_custom_call.1} parent=1 // pred_check_branch
      %14 = sbr.rel (0) target = $region13
    $region12: #{tpu_custom_call.1} parent=1 // pred_region
      _
    $region13: #{tpu_custom_call.1} parent=1 // pred_fallthru
      _
    %v15 = vld [vmem:[%s2] sm:$0xff]
    %v16 = vld [vmem:[%s2 + $0x8] sm:$0xff]
    %v17 = vld [vmem:[%s0] sm:$0xff]
    %19 = vset.pattern.permute.xlu0 0
    %20 = vperm.xlu0 %19, %v17
    %v21 = vpop.permute.xlu0 %20
    %v23 = vmul.f32 %v15, %v21
    %v24 = vmul.f32 %v16, %v21
    %v25 = vld [vmem:[%s1] sm:$0xff]
    %27 = vset.pattern.permute.xlu0 0
    %28 = vperm.xlu0 %27, %v25
    %v29 = vpop.permute.xlu0 %28
    %v31 = vadd.f32 %v23, %v29
    %v32 = vadd.f32 %v24, %v29
    %33 = vst [vmem:[#allocation2] sm:$0xff] %v31
    %34 = vst [vmem:[#allocation2 + $0x8] sm:$0xff] %v32
    // Predicated region
    $region14: #{tpu_custom_call.1} parent=1 // pred_check
      _
    $region15: #{tpu_custom_call.1} parent=1 // pred_check_branch
      %36 = sbr.rel (0) target = $region17
    $region16: #{tpu_custom_call.1} parent=1 // pred_region
      %s38 = ssub.s32 256, 256
      %39 = vsyncadd [#allocation3], %s38
      %s41 = sshll.u32 [#allocation2], 4
      %s42 = int_to_ptr.vmem [resolvable:$true] %s41
      %44 = dma.vmem_to_hbm [thread:$0]  %s42, 256, %s3, [#allocation3]
    $region17: #{tpu_custom_call.1} parent=1 // pred_fallthru
      _
    // Predicated region
    $region18: #{tpu_custom_call.1} parent=1 // pred_check
      _
    $region19: #{tpu_custom_call.1} parent=1 // pred_check_branch
      %46 = sbr.rel (0) target = $region21
    $region20: #{tpu_custom_call.1} parent=1 // pred_region
      %47 = dma.done [#allocation3], 256
    $region21: #{tpu_custom_call.1} parent=1 // pred_fallthru
      _
    %48 = vsyncpa [#allocation3], 1

</llo_original>
